<compile_context>
chip_gen: v5e
topology: v5e:2x2
jax: 0.10.0
libtpu: 0.0.40
codegen_flags: <defaults>
</compile_context>

<pallas_src>
import jax
import jax.numpy as jnp
from jax import lax
from jax.experimental import pallas as pl
from jax.experimental.pallas import tpu as pltpu


def _round_up(x, m):
    return ((x + m - 1) // m) * m


def _choose_hidden_tile(H, desired, align=128):
    """Largest multiple of `align` that divides H and is <= desired (else H)."""
    if H <= desired:
        return H
    t = (desired // align) * align
    while t >= align:
        if H % t == 0:
            return t
        t -= align
    return H


def _ffn_kernel(x_ref, w1_ref, w3_ref, w2_ref, o_ref, acc_ref):
    # x_ref : (tm, D)   bf16 token tile (same block for every h step)
    # w1_ref: (th, D)   bf16 slice of w1 (PyTorch layout: out x in)
    # w3_ref: (th, D)   bf16 slice of w3
    # w2_ref: (D, th)   bf16 slice of w2 (PyTorch layout: out x in)
    # o_ref : (tm, D)   output tile (written on last h step)
    # acc_ref: (tm, D)  f32 accumulator scratch
    h = pl.program_id(1)

    @pl.when(h == 0)
    def _():
        acc_ref[...] = jnp.zeros_like(acc_ref)

    x = x_ref[...]
    # Contract the D axis of x against the D axis of the (th, D) weights,
    # i.e. x @ w.T without any wrapper-side transpose.
    dn = (((1,), (1,)), ((), ()))
    h1 = lax.dot_general(x, w1_ref[...], dimension_numbers=dn,
                         preferred_element_type=jnp.float32)          # (tm, th) f32
    h3 = lax.dot_general(x, w3_ref[...], dimension_numbers=dn,
                         preferred_element_type=jnp.float32)          # (tm, th) f32

    # SwiGLU gate in f32 (sigmoid goes to the EUP slot, free vs. the MXU).
    g = (h1 * jax.nn.sigmoid(h1)) * h3

    # Down-projection partial sum: out[m, d] += sum_h g[m, h] * w2[d, h]
    acc_ref[...] += lax.dot_general(
        g.astype(w2_ref.dtype), w2_ref[...], dimension_numbers=dn,
        preferred_element_type=jnp.float32)

    @pl.when(h == pl.num_programs(1) - 1)
    def _():
        o_ref[...] = acc_ref[...].astype(o_ref.dtype)


def feed_forward_pallas(x, w1, w2, w3, *, tile_m=256, tile_h=512,
                        compute_dtype=jnp.bfloat16):
    """x: (B, S, D). w1, w3: (H, D); w2: (D, H) — PyTorch nn.Linear layout."""
    B, S, D = x.shape
    H = w1.shape[0]
    assert w3.shape == (H, D) and w2.shape == (D, H)
    M = B * S
    out_dtype = x.dtype

    # --- tile selection -----------------------------------------------------
    # M tile: big (MXU-friendly); pad M up instead of asserting divisibility.
    tm = min(tile_m, _round_up(M, 16))          # 16-row alignment covers bf16 packing
    m_pad = _round_up(M, tm)
    # H tile: must divide H exactly (H is already a multiple of `multiple_of`).
    th = _choose_hidden_tile(H, tile_h, align=128)

    # --- operand prep (no transposes; bf16 for the MXU) ----------------------
    # NOTE: in production, store the weights in `compute_dtype` so these casts
    # are no-ops.
    x2d = x.reshape(M, D).astype(compute_dtype)
    if m_pad != M:
        x2d = jnp.pad(x2d, ((0, m_pad - M), (0, 0)))
    w1c = w1.astype(compute_dtype)
    w3c = w3.astype(compute_dtype)
    w2c = w2.astype(compute_dtype)

    wbytes = jnp.dtype(compute_dtype).itemsize
    cost = pl.CostEstimate(
        flops=6 * m_pad * D * H,
        transcendentals=m_pad * H,
        bytes_accessed=(m_pad * D * wbytes            # x
                        + 3 * D * H * wbytes          # w1, w3, w2
                        + m_pad * D * jnp.dtype(out_dtype).itemsize),  # out
    )

    out2d = pl.pallas_call(
        _ffn_kernel,
        out_shape=jax.ShapeDtypeStruct((m_pad, D), out_dtype),
        grid_spec=pltpu.PrefetchScalarGridSpec(
            num_scalar_prefetch=0,
            grid=(m_pad // tm, H // th),
            in_specs=[
                pl.BlockSpec((tm, D), lambda i, h: (i, 0)),   # x tile
                pl.BlockSpec((th, D), lambda i, h: (h, 0)),   # w1 slice
                pl.BlockSpec((th, D), lambda i, h: (h, 0)),   # w3 slice
                pl.BlockSpec((D, th), lambda i, h: (0, h)),   # w2 slice
            ],
            out_specs=pl.BlockSpec((tm, D), lambda i, h: (i, 0)),
            scratch_shapes=[pltpu.VMEM((tm, D), jnp.float32)],
        ),
        compiler_params=pltpu.CompilerParams(
            dimension_semantics=("parallel", "arbitrary"),
            vmem_limit_bytes=48 * 1024 * 1024,
        ),
        cost_estimate=cost,
    )(x2d, w1c, w3c, w2c)

    return out2d[:M].reshape(B, S, D)


def _round_hidden(hidden_dim, multiple_of):
    hidden_dim = int(2 * hidden_dim / 3)
    return multiple_of * ((hidden_dim + multiple_of - 1) // multiple_of)


if __name__ == "__main__":
    # Small, TPU-friendly shapes consistent with the module.
    batch, seq = 2, 8
    dim = 128
    hidden_dim_arg = 4 * dim                     # typical LLaMA arg: 4*dim
    multiple_of = 128
    hidden = _round_hidden(hidden_dim_arg, multiple_of)   # int(2*512/3)=341 -> 384

    key = jax.random.PRNGKey(0)
    kx, k1, k2, k3 = jax.random.split(key, 4)

    x = jax.random.normal(kx, (batch, seq, dim), dtype=jnp.float32)
    # PyTorch nn.Linear weight layout: (out_features, in_features).
    w1 = jax.random.normal(k1, (hidden, dim), dtype=jnp.float32) * (1.0 / dim ** 0.5)
    w3 = jax.random.normal(k3, (hidden, dim), dtype=jnp.float32) * (1.0 / dim ** 0.5)
    w2 = jax.random.normal(k2, (dim, hidden), dtype=jnp.float32) * (1.0 / hidden ** 0.5)

    # Small tile_h so the demo exercises the streamed-H accumulator (3 H steps);
    # the defaults (tile_m=256, tile_h=512) are the production settings.
    out = feed_forward_pallas(x, w1, w2, w3, tile_h=128)
    out = jax.block_until_ready(out)

    # Pure-JAX f32 reference (same math as the PyTorch forward).
    h1 = x @ w1.T
    h3 = x @ w3.T
    ref = ((h1 * jax.nn.sigmoid(h1)) * h3) @ w2.T

    assert out.shape == (batch, seq, dim)
    # bf16 operands with f32 accumulation -> bf16-level tolerance vs f32 ref.
    assert jnp.allclose(out.astype(jnp.float32), ref, atol=5e-2, rtol=5e-2), (
        float(jnp.max(jnp.abs(out.astype(jnp.float32) - ref))))

    print("KERNEL_OK")
</pallas_src>

<mosaic_0001>
module attributes {stable_mosaic.version = 11 : i64} {
  func.func @_ffn_kernel(%arg0: i32, %arg1: i32, %arg2: memref<16x128xbf16, #tpu.memory_space<vmem>>, %arg3: memref<128x128xbf16, #tpu.memory_space<vmem>>, %arg4: memref<128x128xbf16, #tpu.memory_space<vmem>>, %arg5: memref<128x128xbf16, #tpu.memory_space<vmem>>, %arg6: memref<16x128xf32, #tpu.memory_space<vmem>>, %arg7: memref<16x128xf32, #tpu.memory_space<vmem>>) attributes {dimension_semantics = [#tpu.dimension_semantics<parallel>, #tpu.dimension_semantics<arbitrary>], iteration_bounds = array<i64: 1, 3>, scalar_prefetch = 0 : i64, scratch_operands = 1 : i64, tpu.core_type = #tpu.core_type<tc>, window_params = [{transform_indices = @transform_0, window_bounds = array<i64: 16, 128>}, {transform_indices = @transform_1, window_bounds = array<i64: 128, 128>}, {transform_indices = @transform_2, window_bounds = array<i64: 128, 128>}, {transform_indices = @transform_3, window_bounds = array<i64: 128, 128>}, {transform_indices = @transform_4, window_bounds = array<i64: 16, 128>}]} {
    %c0_i32 = arith.constant 0 : i32
    %0 = arith.cmpi eq, %arg1, %c0_i32 : i32
    %1 = arith.extui %0 : i1 to i32
    %c0_i32_0 = arith.constant 0 : i32
    %2 = arith.cmpi ne, %1, %c0_i32_0 : i32
    scf.if %2 {
      %cst_16 = arith.constant 0.000000e+00 : f32
      %24 = vector.broadcast %cst_16 : f32 to vector<16x128xf32>
      %c0_17 = arith.constant 0 : index
      %c0_18 = arith.constant 0 : index
      %25 = vector.load %arg7[%c0_17, %c0_18] : memref<16x128xf32, #tpu.memory_space<vmem>>, vector<16x128xf32>
      tpu.vector_store %arg7[%c0_17, %c0_18], %24 {strides = array<i32>} : memref<16x128xf32, #tpu.memory_space<vmem>>, vector<16x128xf32>,
    } else {
    }
    %c0 = arith.constant 0 : index
    %c0_1 = arith.constant 0 : index
    %3 = vector.load %arg2[%c0, %c0_1] : memref<16x128xbf16, #tpu.memory_space<vmem>>, vector<16x128xbf16>
    %c0_2 = arith.constant 0 : index
    %c0_3 = arith.constant 0 : index
    %4 = vector.load %arg3[%c0_2, %c0_3] : memref<128x128xbf16, #tpu.memory_space<vmem>>, vector<128x128xbf16>
    %cst = arith.constant dense<0.000000e+00> : vector<16x128xf32>
    %5 = tpu.matmul %3, %4, %cst {dimension_numbers = #tpu.dot_dimension_numbers<[1], [1], [0], [0], [0, 0, 1, 0], [], []>} : vector<16x128xbf16>, vector<128x128xbf16>, vector<16x128xf32> -> vector<16x128xf32>
    %c0_4 = arith.constant 0 : index
    %c0_5 = arith.constant 0 : index
    %6 = vector.load %arg4[%c0_4, %c0_5] : memref<128x128xbf16, #tpu.memory_space<vmem>>, vector<128x128xbf16>
    %cst_6 = arith.constant dense<0.000000e+00> : vector<16x128xf32>
    %7 = tpu.matmul %3, %6, %cst_6 {dimension_numbers = #tpu.dot_dimension_numbers<[1], [1], [0], [0], [0, 0, 1, 0], [], []>} : vector<16x128xbf16>, vector<128x128xbf16>, vector<16x128xf32> -> vector<16x128xf32>
    %8 = arith.negf %5 : vector<16x128xf32>
    %9 = math.exp %8 : vector<16x128xf32>
    %cst_7 = arith.constant 1.000000e+00 : f32
    %10 = vector.broadcast %cst_7 : f32 to vector<16x128xf32>
    %11 = arith.addf %10, %9 : vector<16x128xf32>
    %12 = arith.divf %10, %11 : vector<16x128xf32>
    %13 = arith.mulf %5, %12 : vector<16x128xf32>
    %14 = arith.mulf %13, %7 : vector<16x128xf32>
    %c0_8 = arith.constant 0 : index
    %c0_9 = arith.constant 0 : index
    %15 = vector.load %arg7[%c0_8, %c0_9] : memref<16x128xf32, #tpu.memory_space<vmem>>, vector<16x128xf32>
    %16 = arith.truncf %14 : vector<16x128xf32> to vector<16x128xbf16>
    %c0_10 = arith.constant 0 : index
    %c0_11 = arith.constant 0 : index
    %17 = vector.load %arg5[%c0_10, %c0_11] : memref<128x128xbf16, #tpu.memory_space<vmem>>, vector<128x128xbf16>
    %cst_12 = arith.constant dense<0.000000e+00> : vector<16x128xf32>
    %18 = tpu.matmul %16, %17, %cst_12 {dimension_numbers = #tpu.dot_dimension_numbers<[1], [1], [0], [0], [0, 0, 1, 0], [], []>} : vector<16x128xbf16>, vector<128x128xbf16>, vector<16x128xf32> -> vector<16x128xf32>
    %19 = arith.addf %15, %18 : vector<16x128xf32>
    %c0_13 = arith.constant 0 : index
    %c0_14 = arith.constant 0 : index
    %20 = vector.load %arg7[%c0_13, %c0_14] : memref<16x128xf32, #tpu.memory_space<vmem>>, vector<16x128xf32>
    tpu.vector_store %arg7[%c0_13, %c0_14], %19 {strides = array<i32>} : memref<16x128xf32, #tpu.memory_space<vmem>>, vector<16x128xf32>,
    %c2_i32 = arith.constant 2 : i32
    %21 = arith.cmpi eq, %arg1, %c2_i32 : i32
    %22 = arith.extui %21 : i1 to i32
    %c0_i32_15 = arith.constant 0 : i32
    %23 = arith.cmpi ne, %22, %c0_i32_15 : i32
    scf.if %23 {
      %c0_16 = arith.constant 0 : index
      %c0_17 = arith.constant 0 : index
      %24 = vector.load %arg7[%c0_16, %c0_17] : memref<16x128xf32, #tpu.memory_space<vmem>>, vector<16x128xf32>
      %c0_18 = arith.constant 0 : index
      %c0_19 = arith.constant 0 : index
      %25 = vector.load %arg6[%c0_18, %c0_19] : memref<16x128xf32, #tpu.memory_space<vmem>>, vector<16x128xf32>
      tpu.vector_store %arg6[%c0_18, %c0_19], %24 {strides = array<i32>} : memref<16x128xf32, #tpu.memory_space<vmem>>, vector<16x128xf32>,
    } else {
    }
    return
  }
  func.func @transform_0(%arg0: i32, %arg1: i32) -> (i32, i32) {
    %c0_i32 = arith.constant 0 : i32
    %c0_i32_0 = arith.constant 0 : i32
    return %arg0, %c0_i32 : i32, i32
  }
  func.func @transform_1(%arg0: i32, %arg1: i32) -> (i32, i32) {
    %c0_i32 = arith.constant 0 : i32
    %c0_i32_0 = arith.constant 0 : i32
    return %arg1, %c0_i32 : i32, i32
  }
  func.func @transform_2(%arg0: i32, %arg1: i32) -> (i32, i32) {
    %c0_i32 = arith.constant 0 : i32
    %c0_i32_0 = arith.constant 0 : i32
    return %arg1, %c0_i32 : i32, i32
  }
  func.func @transform_3(%arg0: i32, %arg1: i32) -> (i32, i32) {
    %c0_i32 = arith.constant 0 : i32
    %c0_i32_0 = arith.constant 0 : i32
    return %c0_i32, %arg1 : i32, i32
  }
  func.func @transform_4(%arg0: i32, %arg1: i32) -> (i32, i32) {
    %c0_i32 = arith.constant 0 : i32
    %c0_i32_0 = arith.constant 0 : i32
    return %arg0, %c0_i32 : i32, i32
  }
}

</mosaic_0001>

<llo_original>
// kernel: tpu_custom_call.1
$region0: #{tpu_custom_call.1}
  #allocation0 [shape = 'u32[]', space=smem, size = 0x4, offset = 0x4, fixed_abs, tag = 'smem constant byte address 0x4 - core index']
  #allocation1 [shape = 'u32[72,128]{1,0:T(1,128)}', space=vmem, size = 0x9000, scoped, tag = 'internal scratch']
  #allocation2 [shape = 'f32[16,128]{1,0:T(8,128)}', space=vmem, size = 0x2000, scoped, tag = 'scratch operand']
  %s0 = inlined_call_operand.hbm [shape: bf16[16,128], index: 0, kind: input, shape index: {}]
  %s1 = inlined_call_operand.hbm [shape: bf16[384,128], index: 1, kind: input, shape index: {}]
  %s2 = inlined_call_operand.hbm [shape: bf16[384,128], index: 2, kind: input, shape index: {}]
  %s3 = inlined_call_operand.hbm [shape: bf16[128,384], index: 3, kind: input, shape index: {}]
  %s4 = inlined_call_operand.hbm [shape: f32[16,128], index: 4, kind: output, shape index: {}]
  %s5 = sld [smem:[#allocation0]]
  $region73: #{tpu_custom_call.1} parent=0
    _
  %s7 = ssub.s32 1, %s5
  %s8 = scalar_select 0, %s7, %s5
  $region1: #{tpu_custom_call.1} parent=0
    #allocation3 [shape = 'u8[4096]{0}', space=vmem, size = 0x1000, scoped, tag = 'input window, operand 0, single buffered']
    #allocation4 [shape = 's32[2]{0}', space=sflag, size = 0x8, scoped, tag = 'scoped memory for tpu_custom_call.1']
    #allocation5 [shape = 's32[2]{0}', space=sflag, size = 0x8, scoped, tag = 'scoped memory for tpu_custom_call.1']
    #allocation6 [shape = 'u8[65536]{0}', space=vmem, size = 0x10000, scoped, tag = 'input window, operand 1']
    #allocation7 [shape = 's32[2]{0}', space=sflag, size = 0x8, scoped, tag = 'scoped memory for tpu_custom_call.1']
    #allocation8 [shape = 'u8[65536]{0}', space=vmem, size = 0x10000, scoped, tag = 'input window, operand 2']
    #allocation9 [shape = 'u8[65536]{0}', space=vmem, size = 0x10000, scoped, tag = 'input window, operand 3']
    #allocation10 [shape = 's32[2]{0}', space=sflag, size = 0x8, scoped, tag = 'scoped memory for tpu_custom_call.1']
    #allocation11 [shape = 'u8[8192]{0}', space=vmem, size = 0x2000, scoped, tag = 'output window, operand 0, single buffered']
    %9 = vsyncpa [#allocation4], 0
    %10 = vsyncpa [#allocation7], 0
    %s11 = scalar_lea.sflag [#allocation7], 1
    %12 = vsyncpa %s11, 0
    %13 = vsyncpa [#allocation10], 0
    %s14 = scalar_lea.sflag [#allocation10], 1
    %15 = vsyncpa %s14, 0
    %16 = vsyncpa [#allocation5], 0
    loop: start=0, step=1, limit=5
    $region2: #{tpu_custom_call.1} parent=1 // loop_pre_header
      _
    $region3: #{tpu_custom_call.1} parent=1 // loop_header
      %s18 = sphi 0, %s22
      %p19 = scmp.ge.s32.totalorder %s18, 5
      %s25 = sphi 0, %s37
      %s26 = sphi 0, %s33
      %s27 = sphi 0, %s25
      %s28 = sphi 0, %s26
      %s29 = sphi 0, %s27
      %s30 = sphi 0, %s28
      %s40 = sphi 0, %s42
      %s43 = sphi 0, %s40
      %s44 = sphi 0, %s43
      %s60 = sphi 0, %s44
      %s66 = sphi 0, %s68
      %s69 = sphi 0, %s66
      %s70 = sphi 0, %s69
      %s86 = sphi 0, %s70
      %s92 = sphi 0, %s94
      %s95 = sphi 0, %s92
      %s96 = sphi 0, %s95
      %s112 = sphi 0, %s96
      %s118 = sphi 0, %s120
      %s121 = sphi 0, %s118
      %s122 = sphi 0, %s121
      %s138 = sphi 0, %s122
      %s144 = sphi 0, %s146
      %s147 = sphi 0, %s144
      %s148 = sphi 0, %s147
      %s164 = sphi 0, %s148
    $region4: #{tpu_custom_call.1} parent=1 // loop_header_branch
      %21 = sbr.rel (%p19) target = $region8
    $region5: #{tpu_custom_call.1} parent=1 // loop_body
      %s23 = ssub.s32 %s18, 1
      %s24 = ssub.s32 %s18, 2
      %s31 = sadd.s32 1, %s26
      %p32 = scmp.ge.s32.totalorder %s31, 3
      %s33 = scalar_select %p32, 0, %s31
      %s34 = sadd.s32 1, %s25
      %s35 = scalar_select %p32, %s34, %s25
      %p36 = scmp.ge.s32.totalorder %s35, 1
      %s37 = scalar_select %p36, 0, %s35
      %s38 = ssub.s32 %s25, %s37
      %p39 = scmp.eq.s32.totalorder %s38, 0
      %s41 = sadd.s32 %s40, 1
      %s42 = scalar_select %p39, %s40, %s41
      %p45 = pneg %p39
      %p46 = scmp.eq.s32.totalorder %s18, 2
      %p47 = por %p45, %p46
      %p48 = scmp.ne.s32.totalorder %s40, %s43
      %p49 = scmp.eq.s32.totalorder %s18, 0
      %p50 = por %p48, %p49
      %p51 = scmp.ne.s32.totalorder %s40, %s43
      %p52 = scmp.eq.s32.totalorder %s23, 2
      %p53 = por %p51, %p52
      %p54 = scmp.ne.s32.totalorder %s43, %s44
      %p55 = scmp.eq.s32.totalorder %s23, 0
      %p56 = por %p54, %p55
      %p57 = scmp.ne.s32.totalorder %s43, %s44
      %p58 = scmp.eq.s32.totalorder %s24, 2
      %p59 = por %p57, %p58
      %p61 = scmp.ne.s32.totalorder %s44, %s60
      %p62 = scmp.eq.s32.totalorder %s24, 0
      %p63 = por %p61, %p62
      %s64 = ssub.s32 %s26, %s33
      %p65 = scmp.eq.s32.totalorder %s64, 0
      %s67 = sadd.s32 %s66, 1
      %s68 = scalar_select %p65, %s66, %s67
      %p71 = pneg %p65
      %p72 = scmp.eq.s32.totalorder %s18, 2
      %p73 = por %p71, %p72
      %p74 = scmp.ne.s32.totalorder %s66, %s69
      %p75 = scmp.eq.s32.totalorder %s18, 0
      %p76 = por %p74, %p75
      %p77 = scmp.ne.s32.totalorder %s66, %s69
      %p78 = scmp.eq.s32.totalorder %s23, 2
      %p79 = por %p77, %p78
      %p80 = scmp.ne.s32.totalorder %s69, %s70
      %p81 = scmp.eq.s32.totalorder %s23, 0
      %p82 = por %p80, %p81
      %p83 = scmp.ne.s32.totalorder %s69, %s70
      %p84 = scmp.eq.s32.totalorder %s24, 2
      %p85 = por %p83, %p84
      %p87 = scmp.ne.s32.totalorder %s70, %s86
      %p88 = scmp.eq.s32.totalorder %s24, 0
      %p89 = por %p87, %p88
      %s90 = ssub.s32 %s26, %s33
      %p91 = scmp.eq.s32.totalorder %s90, 0
      %s93 = sadd.s32 %s92, 1
      %s94 = scalar_select %p91, %s92, %s93
      %p97 = pneg %p91
      %p98 = scmp.eq.s32.totalorder %s18, 2
      %p99 = por %p97, %p98
      %p100 = scmp.ne.s32.totalorder %s92, %s95
      %p101 = scmp.eq.s32.totalorder %s18, 0
      %p102 = por %p100, %p101
      %p103 = scmp.ne.s32.totalorder %s92, %s95
      %p104 = scmp.eq.s32.totalorder %s23, 2
      %p105 = por %p103, %p104
      %p106 = scmp.ne.s32.totalorder %s95, %s96
      %p107 = scmp.eq.s32.totalorder %s23, 0
      %p108 = por %p106, %p107
      %p109 = scmp.ne.s32.totalorder %s95, %s96
      %p110 = scmp.eq.s32.totalorder %s24, 2
      %p111 = por %p109, %p110
      %p113 = scmp.ne.s32.totalorder %s96, %s112
      %p114 = scmp.eq.s32.totalorder %s24, 0
      %p115 = por %p113, %p114
      %s116 = ssub.s32 %s26, %s33
      %p117 = scmp.eq.s32.totalorder %s116, 0
      %s119 = sadd.s32 %s118, 1
      %s120 = scalar_select %p117, %s118, %s119
      %p123 = pneg %p117
      %p124 = scmp.eq.s32.totalorder %s18, 2
      %p125 = por %p123, %p124
      %p126 = scmp.ne.s32.totalorder %s118, %s121
      %p127 = scmp.eq.s32.totalorder %s18, 0
      %p128 = por %p126, %p127
      %p129 = scmp.ne.s32.totalorder %s118, %s121
      %p130 = scmp.eq.s32.totalorder %s23, 2
      %p131 = por %p129, %p130
      %p132 = scmp.ne.s32.totalorder %s121, %s122
      %p133 = scmp.eq.s32.totalorder %s23, 0
      %p134 = por %p132, %p133
      %p135 = scmp.ne.s32.totalorder %s121, %s122
      %p136 = scmp.eq.s32.totalorder %s24, 2
      %p137 = por %p135, %p136
      %p139 = scmp.ne.s32.totalorder %s122, %s138
      %p140 = scmp.eq.s32.totalorder %s24, 0
      %p141 = por %p139, %p140
      %s142 = ssub.s32 %s25, %s37
      %p143 = scmp.eq.s32.totalorder %s142, 0
      %s145 = sadd.s32 %s144, 1
      %s146 = scalar_select %p143, %s144, %s145
      %p149 = pneg %p143
      %p150 = scmp.eq.s32.totalorder %s18, 2
      %p151 = por %p149, %p150
      %p152 = scmp.ne.s32.totalorder %s144, %s147
      %p153 = scmp.eq.s32.totalorder %s18, 0
      %p154 = por %p152, %p153
      %p155 = scmp.ne.s32.totalorder %s144, %s147
      %p156 = scmp.eq.s32.totalorder %s23, 2
      %p157 = por %p155, %p156
      %p158 = scmp.ne.s32.totalorder %s147, %s148
      %p159 = scmp.eq.s32.totalorder %s23, 0
      %p160 = por %p158, %p159
      %p161 = scmp.ne.s32.totalorder %s147, %s148
      %p162 = scmp.eq.s32.totalorder %s24, 2
      %p163 = por %p161, %p162
      %p165 = scmp.ne.s32.totalorder %s148, %s164
      %p166 = scmp.eq.s32.totalorder %s24, 0
      %p167 = por %p165, %p166
      %p168 = scmp.le.s32.totalorder 1, %s18
      %p169 = scmp.lt.s32.totalorder %s18, 4
      %p170 = pnand %p168, %p169
      %p171 = pneg %p170
      // Predicated region
      $region9: #{tpu_custom_call.1} parent=5 // pred_check
        _
      $region10: #{tpu_custom_call.1} parent=5 // pred_check_branch
        %173 = sbr.rel (%p170) target = $region12
      $region11: #{tpu_custom_call.1} parent=5 // pred_region
        %s174 = ssub.s32 %s18, 1
        // Predicated region
        $region13: #{tpu_custom_call.1} parent=11 // pred_check
          %p175 = pneg %p56
        $region14: #{tpu_custom_call.1} parent=11 // pred_check_branch
          %177 = sbr.rel (%p175) target = $region16
        $region15: #{tpu_custom_call.1} parent=11 // pred_region
          %s178 = smul.u32 2, %s27
          %180 = vsyncadd [#allocation4], 0
          %s181 = smul.addr %s178, 4
          %s182 = scalar_lea.hbm %s0, %s181
          %s183 = sshll.u32 %s182, 4
          %s184 = int_to_ptr.hbm [resolvable:$true] %s183
          %s185 = sshll.u32 [#allocation3], 4
          %s186 = int_to_ptr.vmem [resolvable:$true] %s185
          %191 = dma.hbm_to_vmem [thread:$0]  %s184, 128, %s186, [#allocation4], 64, 64, 4
        $region16: #{tpu_custom_call.1} parent=11 // pred_fallthru
          _
      $region12: #{tpu_custom_call.1} parent=5 // pred_fallthru
        _
      %p192 = scmp.lt.s32.totalorder %s18, 3
      // Predicated region
      $region17: #{tpu_custom_call.1} parent=5 // pred_check
        %p193 = pneg %p192
      $region18: #{tpu_custom_call.1} parent=5 // pred_check_branch
        %195 = sbr.rel (%p193) target = $region20
      $region19: #{tpu_custom_call.1} parent=5 // pred_region
        // Predicated region
        $region21: #{tpu_custom_call.1} parent=19 // pred_check
          %p196 = pneg %p76
        $region22: #{tpu_custom_call.1} parent=19 // pred_check_branch
          %198 = sbr.rel (%p196) target = $region24
        $region23: #{tpu_custom_call.1} parent=19 // pred_region
          %s199 = sand.u32 %s18, 1
          %s200 = scalar_lea.sflag [#allocation7], %s199
          %s201 = sand.u32 %s66, 1
          %s202 = smul.addr %s201, 64
          %s203 = scalar_lea.vmem [#allocation6], %s202
          %s204 = smul.u32 16, %s26
          %206 = vsyncadd %s200, 0
          %s207 = smul.addr %s204, 4
          %s208 = scalar_lea.hbm %s1, %s207
          %s209 = sshll.u32 %s208, 4
          %s210 = int_to_ptr.hbm [resolvable:$true] %s209
          %s211 = sshll.u32 %s203, 4
          %s212 = int_to_ptr.vmem [resolvable:$true] %s211
          %217 = dma.hbm_to_vmem [thread:$0]  %s210, 1024, %s212, %s200, 64, 64, 4
        $region24: #{tpu_custom_call.1} parent=19 // pred_fallthru
          _
        // Predicated region
        $region25: #{tpu_custom_call.1} parent=19 // pred_check
          %p218 = pneg %p102
        $region26: #{tpu_custom_call.1} parent=19 // pred_check_branch
          %220 = sbr.rel (%p218) target = $region28
        $region27: #{tpu_custom_call.1} parent=19 // pred_region
          %s221 = sand.u32 %s18, 1
          %s222 = scalar_lea.sflag [#allocation7], %s221
          %s223 = sand.u32 %s92, 1
          %s224 = smul.addr %s223, 64
          %s225 = scalar_lea.vmem [#allocation8], %s224
          %s226 = smul.u32 16, %s26
          %228 = vsyncadd %s222, 0
          %s229 = smul.addr %s226, 4
          %s230 = scalar_lea.hbm %s2, %s229
          %s231 = sshll.u32 %s230, 4
          %s232 = int_to_ptr.hbm [resolvable:$true] %s231
          %s233 = sshll.u32 %s225, 4
          %s234 = int_to_ptr.vmem [resolvable:$true] %s233
          %239 = dma.hbm_to_vmem [thread:$0]  %s232, 1024, %s234, %s222, 64, 64, 4
        $region28: #{tpu_custom_call.1} parent=19 // pred_fallthru
          _
        // Predicated region
        $region29: #{tpu_custom_call.1} parent=19 // pred_check
          %p240 = pneg %p128
        $region30: #{tpu_custom_call.1} parent=19 // pred_check_branch
          %242 = sbr.rel (%p240) target = $region32
        $region31: #{tpu_custom_call.1} parent=19 // pred_region
          %s243 = sand.u32 %s118, 1
          %s244 = scalar_lea.sflag [#allocation10], %s243
          %s245 = sand.u32 %s118, 1
          %s246 = smul.addr %s245, 64
          %s247 = scalar_lea.vmem [#allocation9], %s246
          %249 = vsyncadd %s244, 0
          %s250 = smul.addr %s26, 4
          %s251 = scalar_lea.hbm %s3, %s250
          %s252 = sshll.u32 %s251, 4
          %s253 = int_to_ptr.hbm [resolvable:$true] %s252
          %s254 = sshll.u32 %s247, 4
          %s255 = int_to_ptr.vmem [resolvable:$true] %s254
          %260 = dma.hbm_to_vmem [thread:$0]  %s253, 1024, %s255, %s244, 192, 64, 4
        $region32: #{tpu_custom_call.1} parent=19 // pred_fallthru
          _
      $region20: #{tpu_custom_call.1} parent=5 // pred_fallthru
        _
      %p261 = scmp.le.s32.totalorder 1, %s18
      %p262 = scmp.lt.s32.totalorder %s18, 4
      %p263 = pnand %p261, %p262
      %p264 = pneg %p263
      // Predicated region
      $region33: #{tpu_custom_call.1} parent=5 // pred_check
        _
      $region34: #{tpu_custom_call.1} parent=5 // pred_check_branch
        %266 = sbr.rel (%p263) target = $region36
      $region35: #{tpu_custom_call.1} parent=5 // pred_region
        %s267 = ssub.s32 %s18, 1
        // Predicated region
        $region37: #{tpu_custom_call.1} parent=35 // pred_check
          %p268 = pneg %p56
        $region38: #{tpu_custom_call.1} parent=35 // pred_check_branch
          %270 = sbr.rel (%p268) target = $region40
        $region39: #{tpu_custom_call.1} parent=35 // pred_region
          %272 = dma.done [#allocation4], 128
        $region40: #{tpu_custom_call.1} parent=35 // pred_fallthru
          _
        %s273 = sand.u32 %s23, 1
        %s274 = scalar_lea.sflag [#allocation7], %s273
        %s275 = sand.u32 %s69, 1
        %s276 = smul.addr %s275, 64
        %s277 = scalar_lea.vmem [#allocation6], %s276
        // Predicated region
        $region41: #{tpu_custom_call.1} parent=35 // pred_check
          %p278 = pneg %p82
        $region42: #{tpu_custom_call.1} parent=35 // pred_check_branch
          %280 = sbr.rel (%p278) target = $region44
        $region43: #{tpu_custom_call.1} parent=35 // pred_region
          %282 = dma.done %s274, 1024
        $region44: #{tpu_custom_call.1} parent=35 // pred_fallthru
          _
        %s283 = sand.u32 %s23, 1
        %s284 = scalar_lea.sflag [#allocation7], %s283
        %s285 = sand.u32 %s95, 1
        %s286 = smul.addr %s285, 64
        %s287 = scalar_lea.vmem [#allocation8], %s286
        // Predicated region
        $region45: #{tpu_custom_call.1} parent=35 // pred_check
          %p288 = pneg %p108
        $region46: #{tpu_custom_call.1} parent=35 // pred_check_branch
          %290 = sbr.rel (%p288) target = $region48
        $region47: #{tpu_custom_call.1} parent=35 // pred_region
          %292 = dma.done %s284, 1024
        $region48: #{tpu_custom_call.1} parent=35 // pred_fallthru
          _
        %s293 = sand.u32 %s121, 1
        %s294 = scalar_lea.sflag [#allocation10], %s293
        %s295 = sand.u32 %s121, 1
        %s296 = smul.addr %s295, 64
        %s297 = scalar_lea.vmem [#allocation9], %s296
        // Predicated region
        $region49: #{tpu_custom_call.1} parent=35 // pred_check
          %p298 = pneg %p134
        $region50: #{tpu_custom_call.1} parent=35 // pred_check_branch
          %300 = sbr.rel (%p298) target = $region52
        $region51: #{tpu_custom_call.1} parent=35 // pred_region
          %302 = dma.done %s294, 1024
        $region52: #{tpu_custom_call.1} parent=35 // pred_fallthru
          _
        %p303 = pneg %p56
        %p304 = pneg %p53
        %s305 = sand.u32 %s23, 1
        %s306 = scalar_lea.sflag [#allocation7], %s305
        %s307 = sand.u32 %s69, 1
        %s308 = smul.addr %s307, 64
        %s309 = scalar_lea.vmem [#allocation6], %s308
        %p310 = pneg %p82
        %p311 = pneg %p79
        %s312 = sand.u32 %s23, 1
        %s313 = scalar_lea.sflag [#allocation7], %s312
        %s314 = sand.u32 %s95, 1
        %s315 = smul.addr %s314, 64
        %s316 = scalar_lea.vmem [#allocation8], %s315
        %p317 = pneg %p108
        %p318 = pneg %p105
        %s319 = sand.u32 %s121, 1
        %s320 = scalar_lea.sflag [#allocation10], %s319
        %s321 = sand.u32 %s121, 1
        %s322 = smul.addr %s321, 64
        %s323 = scalar_lea.vmem [#allocation9], %s322
        %p324 = pneg %p134
        %p325 = pneg %p131
        %p326 = pneg %p160
        %p327 = pneg %p157
        %s328 = smul.u32 2, %s27
        %s329 = smul.u32 16, %s28
        %s330 = smul.u32 16, %s28
        %s331 = smul.u32 2, %s27
        %p332 = scmp.eq.s32.totalorder %s28, 0
        // Predicated region
        $region53: #{tpu_custom_call.1} parent=35 // pred_check
          %p333 = pneg %p332
        $region54: #{tpu_custom_call.1} parent=35 // pred_check_branch
          %335 = sbr.rel (%p333) target = $region56
        $region55: #{tpu_custom_call.1} parent=35 // pred_region
          %336 = vst [vmem:[#allocation2] sm:$0xff] 0.0
          %337 = vst [vmem:[#allocation2 + $0x8] sm:$0xff] 0.0
        $region56: #{tpu_custom_call.1} parent=35 // pred_fallthru
          _
        %v338 = vld [vmem:[#allocation3] sm:$0xf]
        %v339 = vld [vmem:[#allocation3 + $0x4] sm:$0xf]
        %v340 = vld [vmem:[%s277] sm:$0xf]
        %v341 = vld [vmem:[%s277 + $0x4] sm:$0xf]
        %v342 = vld [vmem:[%s277 + $0x8] sm:$0xf]
        %v343 = vld [vmem:[%s277 + $0xc] sm:$0xf]
        %v344 = vld [vmem:[%s277 + $0x10] sm:$0xf]
        %v345 = vld [vmem:[%s277 + $0x14] sm:$0xf]
        %v346 = vld [vmem:[%s277 + $0x18] sm:$0xf]
        %v347 = vld [vmem:[%s277 + $0x1c] sm:$0xf]
        %v348 = vld [vmem:[%s277 + $0x20] sm:$0xf]
        %v349 = vld [vmem:[%s277 + $0x24] sm:$0xf]
        %v350 = vld [vmem:[%s277 + $0x28] sm:$0xf]
        %v351 = vld [vmem:[%s277 + $0x2c] sm:$0xf]
        %v352 = vld [vmem:[%s277 + $0x30] sm:$0xf]
        %v353 = vld [vmem:[%s277 + $0x34] sm:$0xf]
        %v354 = vld [vmem:[%s277 + $0x38] sm:$0xf]
        %v355 = vld [vmem:[%s277 + $0x3c] sm:$0xf]
        %v358 = vunpack.c.l.b16 %v338
        %v359 = vunpack.c.l.b16 %v339
        %v360 = vpack.c.b16 %v359, %v358
        %v378 = vunpack.c.l.b16 %v340
        %v379 = vunpack.c.l.b16 %v341
        %v380 = vunpack.c.l.b16 %v342
        %v381 = vunpack.c.l.b16 %v343
        %v382 = vunpack.c.l.b16 %v344
        %v383 = vunpack.c.l.b16 %v345
        %v384 = vunpack.c.l.b16 %v346
        %v385 = vunpack.c.l.b16 %v347
        %v386 = vunpack.c.l.b16 %v348
        %v387 = vunpack.c.l.b16 %v349
        %v388 = vunpack.c.l.b16 %v350
        %v389 = vunpack.c.l.b16 %v351
        %v390 = vunpack.c.l.b16 %v352
        %v391 = vunpack.c.l.b16 %v353
        %v392 = vunpack.c.l.b16 %v354
        %v393 = vunpack.c.l.b16 %v355
        %v394 = vpack.c.b16 %v379, %v378
        %v395 = vpack.c.b16 %v381, %v380
        %v396 = vpack.c.b16 %v383, %v382
        %v397 = vpack.c.b16 %v385, %v384
        %v398 = vpack.c.b16 %v387, %v386
        %v399 = vpack.c.b16 %v389, %v388
        %v400 = vpack.c.b16 %v391, %v390
        %v401 = vpack.c.b16 %v393, %v392
        %410 = vmatpush.bf16.xpose.msra.mxu0 %v401
        %411 = vmatpush.bf16.xpose.msra.mxu0 %v400
        %412 = vmatpush.bf16.xpose.msra.mxu0 %v399
        %413 = vmatpush.bf16.xpose.msra.mxu0 %v398
        %414 = vmatpush.bf16.xpose.msra.mxu0 %v397
        %415 = vmatpush.bf16.xpose.msra.mxu0 %v396
        %416 = vmatpush.bf16.xpose.msra.mxu0 %v395
        %417 = vmatpush.bf16.xpose.msra.mxu0 %v394
        %418 = vmatmul.bf16.gmra.mxu0 %v360
        %v419 = vpop.f32.mrf.mxu0
        %v420 = vadd.f32 0.0, %v419
        %v421 = vpop.f32.mrf.mxu0
        %v422 = vadd.f32 0.0, %v421
        %423 = vdwg.mxu0
        %v424 = vld [vmem:[%s287] sm:$0xf]
        %v425 = vld [vmem:[%s287 + $0x4] sm:$0xf]
        %v426 = vld [vmem:[%s287 + $0x8] sm:$0xf]
        %v427 = vld [vmem:[%s287 + $0xc] sm:$0xf]
        %v428 = vld [vmem:[%s287 + $0x10] sm:$0xf]
        %v429 = vld [vmem:[%s287 + $0x14] sm:$0xf]
        %v430 = vld [vmem:[%s287 + $0x18] sm:$0xf]
        %v431 = vld [vmem:[%s287 + $0x1c] sm:$0xf]
        %v432 = vld [vmem:[%s287 + $0x20] sm:$0xf]
        %v433 = vld [vmem:[%s287 + $0x24] sm:$0xf]
        %v434 = vld [vmem:[%s287 + $0x28] sm:$0xf]
        %v435 = vld [vmem:[%s287 + $0x2c] sm:$0xf]
        %v436 = vld [vmem:[%s287 + $0x30] sm:$0xf]
        %v437 = vld [vmem:[%s287 + $0x34] sm:$0xf]
        %v438 = vld [vmem:[%s287 + $0x38] sm:$0xf]
        %v439 = vld [vmem:[%s287 + $0x3c] sm:$0xf]
        %v456 = vunpack.c.l.b16 %v424
        %v457 = vunpack.c.l.b16 %v425
        %v458 = vunpack.c.l.b16 %v426
        %v459 = vunpack.c.l.b16 %v427
        %v460 = vunpack.c.l.b16 %v428
        %v461 = vunpack.c.l.b16 %v429
        %v462 = vunpack.c.l.b16 %v430
        %v463 = vunpack.c.l.b16 %v431
        %v464 = vunpack.c.l.b16 %v432
        %v465 = vunpack.c.l.b16 %v433
        %v466 = vunpack.c.l.b16 %v434
        %v467 = vunpack.c.l.b16 %v435
        %v468 = vunpack.c.l.b16 %v436
        %v469 = vunpack.c.l.b16 %v437
        %v470 = vunpack.c.l.b16 %v438
        %v471 = vunpack.c.l.b16 %v439
        %v472 = vpack.c.b16 %v457, %v456
        %v473 = vpack.c.b16 %v459, %v458
        %v474 = vpack.c.b16 %v461, %v460
        %v475 = vpack.c.b16 %v463, %v462
        %v476 = vpack.c.b16 %v465, %v464
        %v477 = vpack.c.b16 %v467, %v466
        %v478 = vpack.c.b16 %v469, %v468
        %v479 = vpack.c.b16 %v471, %v470
        %488 = vmatpush.bf16.xpose.msra.mxu0 %v479
        %489 = vmatpush.bf16.xpose.msra.mxu0 %v478
        %490 = vmatpush.bf16.xpose.msra.mxu0 %v477
        %491 = vmatpush.bf16.xpose.msra.mxu0 %v476
        %492 = vmatpush.bf16.xpose.msra.mxu0 %v475
        %493 = vmatpush.bf16.xpose.msra.mxu0 %v474
        %494 = vmatpush.bf16.xpose.msra.mxu0 %v473
        %495 = vmatpush.bf16.xpose.msra.mxu0 %v472
        %496 = vmatmul.bf16.gmra.mxu0 %v360
        %v497 = vpop.f32.mrf.mxu0
        %v498 = vadd.f32 0.0, %v497
        %v499 = vpop.f32.mrf.mxu0
        %v500 = vadd.f32 0.0, %v499
        %501 = vdwg.mxu0
        %v502 = vxor.u32 %v420, 2147483648
        %v503 = vxor.u32 %v422, 2147483648
        %v504 = vmul.f32 %v502, 1.442695
        %v505 = vpow.pop %v504
        %v506 = vmul.f32 %v503, 1.442695
        %v507 = vpow.pop %v506
        %v508 = vadd.f32 %v505, 1.0
        %v509 = vadd.f32 %v507, 1.0
        %v510 = vrcp.pop %v508
        %v511 = vmul.f32 %v508, %v510
        %v512 = vsub.f32 1.0, %v511
        %v513 = vmul.f32 %v510, %v512
        %v514 = vadd.f32 %v510, %v513
        %vm515 = vweird.f32 %v508
        %vm516 = vweird.f32 %v510
        %vm517 = vmor %vm515, %vm516
        %v518 = vsel %vm517, %v510, %v514
        %v519 = vand.u32 2147483647, %v508
        %vm520 = vcmp.eq.f32.partialorder %v519, 8.507059e+37
        %v521 = vand.u32 %v508, 2147483648
        %v522 = vor.u32 1.1754944e-38, %v521
        %v523 = vsel %vm520, %v522, %v518
        %v524 = vmul.f32 1.0, %v523
        %v525 = vrcp.pop %v509
        %v526 = vmul.f32 %v509, %v525
        %v527 = vsub.f32 1.0, %v526
        %v528 = vmul.f32 %v525, %v527
        %v529 = vadd.f32 %v525, %v528
        %vm530 = vweird.f32 %v509
        %vm531 = vweird.f32 %v525
        %vm532 = vmor %vm530, %vm531
        %v533 = vsel %vm532, %v525, %v529
        %v534 = vand.u32 2147483647, %v509
        %vm535 = vcmp.eq.f32.partialorder %v534, 8.507059e+37
        %v536 = vand.u32 %v509, 2147483648
        %v537 = vor.u32 1.1754944e-38, %v536
        %v538 = vsel %vm535, %v537, %v533
        %v539 = vmul.f32 1.0, %v538
        %v540 = vmul.f32 %v420, %v524
        %v541 = vmul.f32 %v422, %v539
        %v542 = vmul.f32 %v540, %v498
        %v543 = vmul.f32 %v541, %v500
        %v544 = vld [vmem:[#allocation2] sm:$0xff]
        %v545 = vld [vmem:[#allocation2 + $0x8] sm:$0xff]
        %v546 = vpack.c.bf16 %v543, %v542
        %v547 = vld [vmem:[%s297] sm:$0xf]
        %v548 = vld [vmem:[%s297 + $0x4] sm:$0xf]
        %v549 = vld [vmem:[%s297 + $0x8] sm:$0xf]
        %v550 = vld [vmem:[%s297 + $0xc] sm:$0xf]
        %v551 = vld [vmem:[%s297 + $0x10] sm:$0xf]
        %v552 = vld [vmem:[%s297 + $0x14] sm:$0xf]
        %v553 = vld [vmem:[%s297 + $0x18] sm:$0xf]
        %v554 = vld [vmem:[%s297 + $0x1c] sm:$0xf]
        %v555 = vld [vmem:[%s297 + $0x20] sm:$0xf]
        %v556 = vld [vmem:[%s297 + $0x24] sm:$0xf]
        %v557 = vld [vmem:[%s297 + $0x28] sm:$0xf]
        %v558 = vld [vmem:[%s297 + $0x2c] sm:$0xf]
        %v559 = vld [vmem:[%s297 + $0x30] sm:$0xf]
        %v560 = vld [vmem:[%s297 + $0x34] sm:$0xf]
        %v561 = vld [vmem:[%s297 + $0x38] sm:$0xf]
        %v562 = vld [vmem:[%s297 + $0x3c] sm:$0xf]
        %v579 = vunpack.c.l.b16 %v547
        %v580 = vunpack.c.l.b16 %v548
        %v581 = vunpack.c.l.b16 %v549
        %v582 = vunpack.c.l.b16 %v550
        %v583 = vunpack.c.l.b16 %v551
        %v584 = vunpack.c.l.b16 %v552
        %v585 = vunpack.c.l.b16 %v553
        %v586 = vunpack.c.l.b16 %v554
        %v587 = vunpack.c.l.b16 %v555
        %v588 = vunpack.c.l.b16 %v556
        %v589 = vunpack.c.l.b16 %v557
        %v590 = vunpack.c.l.b16 %v558
        %v591 = vunpack.c.l.b16 %v559
        %v592 = vunpack.c.l.b16 %v560
        %v593 = vunpack.c.l.b16 %v561
        %v594 = vunpack.c.l.b16 %v562
        %v595 = vpack.c.b16 %v580, %v579
        %v596 = vpack.c.b16 %v582, %v581
        %v597 = vpack.c.b16 %v584, %v583
        %v598 = vpack.c.b16 %v586, %v585
        %v599 = vpack.c.b16 %v588, %v587
        %v600 = vpack.c.b16 %v590, %v589
        %v601 = vpack.c.b16 %v592, %v591
        %v602 = vpack.c.b16 %v594, %v593
        %611 = vmatpush.bf16.xpose.msra.mxu0 %v602
        %612 = vmatpush.bf16.xpose.msra.mxu0 %v601
        %613 = vmatpush.bf16.xpose.msra.mxu0 %v600
        %614 = vmatpush.bf16.xpose.msra.mxu0 %v599
        %615 = vmatpush.bf16.xpose.msra.mxu0 %v598
        %616 = vmatpush.bf16.xpose.msra.mxu0 %v597
        %617 = vmatpush.bf16.xpose.msra.mxu0 %v596
        %618 = vmatpush.bf16.xpose.msra.mxu0 %v595
        %619 = vmatmul.bf16.gmra.mxu0 %v546
        %v620 = vpop.f32.mrf.mxu0
        %v621 = vadd.f32 0.0, %v620
        %v622 = vpop.f32.mrf.mxu0
        %v623 = vadd.f32 0.0, %v622
        %624 = vdwg.mxu0
        %v625 = vadd.f32 %v544, %v621
        %v626 = vadd.f32 %v545, %v623
        %627 = vst [vmem:[#allocation2] sm:$0xff] %v625
        %628 = vst [vmem:[#allocation2 + $0x8] sm:$0xff] %v626
        %p629 = scmp.eq.s32.totalorder %s28, 2
        // Predicated region
        $region57: #{tpu_custom_call.1} parent=35 // pred_check
          %p630 = pneg %p629
        $region58: #{tpu_custom_call.1} parent=35 // pred_check_branch
          %632 = sbr.rel (%p630) target = $region60
        $region59: #{tpu_custom_call.1} parent=35 // pred_region
          %v633 = vld [vmem:[#allocation2] sm:$0xff]
          %v634 = vld [vmem:[#allocation2 + $0x8] sm:$0xff]
          %635 = vst [vmem:[#allocation11] sm:$0xff] %v633
          %636 = vst [vmem:[#allocation11 + $0x8] sm:$0xff] %v634
        $region60: #{tpu_custom_call.1} parent=35 // pred_fallthru
          _
        // Predicated region
        $region61: #{tpu_custom_call.1} parent=35 // pred_check
          %p637 = pneg %p157
        $region62: #{tpu_custom_call.1} parent=35 // pred_check_branch
          %639 = sbr.rel (%p637) target = $region64
        $region63: #{tpu_custom_call.1} parent=35 // pred_region
          %s640 = smul.u32 2, %s27
          %642 = vsyncadd [#allocation5], 0
          %s643 = smul.addr %s640, 8
          %s644 = scalar_lea.hbm %s4, %s643
          %s645 = sshll.u32 [#allocation11], 4
          %s646 = int_to_ptr.vmem [resolvable:$true] %s645
          %s647 = sshll.u32 %s644, 4
          %s648 = int_to_ptr.hbm [resolvable:$true] %s647
          %653 = dma.vmem_to_hbm [thread:$0]  %s646, 256, %s648, [#allocation5], 128, 128, 8
        $region64: #{tpu_custom_call.1} parent=35 // pred_fallthru
          _
        // Predicated region
        $region65: #{tpu_custom_call.1} parent=35 // pred_check
          %p654 = pneg %p157
        $region66: #{tpu_custom_call.1} parent=35 // pred_check_branch
          %656 = sbr.rel (%p654) target = $region68
        $region67: #{tpu_custom_call.1} parent=35 // pred_region
          %658 = dma.done [#allocation5], 256
        $region68: #{tpu_custom_call.1} parent=35 // pred_fallthru
          _
      $region36: #{tpu_custom_call.1} parent=5 // pred_fallthru
        _
      %p659 = scmp.le.s32.totalorder 2, %s18
      // Predicated region
      $region69: #{tpu_custom_call.1} parent=5 // pred_check
        %p660 = pneg %p659
      $region70: #{tpu_custom_call.1} parent=5 // pred_check_branch
        %662 = sbr.rel (%p660) target = $region72
      $region71: #{tpu_custom_call.1} parent=5 // pred_region
        %s663 = ssub.s32 %s18, 2
      $region72: #{tpu_custom_call.1} parent=5 // pred_fallthru
        _
    $region6: #{tpu_custom_call.1} parent=1 // loop_footer
      %s22 = sadd.s32 1, %s18
    $region7: #{tpu_custom_call.1} parent=1 // loop_footer_branch
      %17 = sbr.rel target = $region3
    $region8: #{tpu_custom_call.1} parent=1 // loop_exit
      _
    %664 = vsyncpa [#allocation4], 1
    %s665 = scalar_lea.sflag [#allocation4], 1
    %666 = vsyncpa %s665, 1
    %667 = vsyncpa [#allocation7], 1
    %s668 = scalar_lea.sflag [#allocation7], 1
    %669 = vsyncpa %s668, 1
    %670 = vsyncpa [#allocation10], 1
    %s671 = scalar_lea.sflag [#allocation10], 1
    %672 = vsyncpa %s671, 1
    %673 = vsyncpa [#allocation5], 1
    %s674 = scalar_lea.sflag [#allocation5], 1
    %675 = vsyncpa %s674, 1

</llo_original>
